<compile_context>
chip_gen: v7x
topology: tpu7x:2x2x1
jax: 0.10.0
libtpu: 0.0.40
codegen_flags: <defaults>
</compile_context>

<pallas_src>
import functools

import jax
import jax.numpy as jnp
from jax.experimental import pallas as pl
from jax.experimental.pallas import tpu as pltpu

_LANES = 128           # vreg lane width; last block dim must be a multiple of this
_MAX_BLOCK_ROWS = 4096 # (4096, 128) f32 block = 2 MiB; x4 for double-buffered in+out = 8 MiB VMEM


def _cdiv(a, b):
    return -(-a // b)


def _round_up(a, b):
    return _cdiv(a, b) * b


def _sublane_multiple(*dtypes):
    """Required sublane multiple for (rows, 128) blocks of the given dtypes.

    Sub-32-bit dtypes pack along sublanes: bf16 needs multiples of 16,
    int8/fp8 need 32.  Take the max over all dtypes touching the block specs.
    """
    m = 8
    for dt in dtypes:
        itemsize = jnp.dtype(dt).itemsize
        packing = max(1, 4 // max(1, itemsize))
        m = max(m, 8 * packing)
    return m


def _choose_block_rows(rows, sub_mult, max_block_rows=_MAX_BLOCK_ROWS):
    """Pick the sublane extent of each (block_rows, 128) tile.

    Targets from the perf review:
      * ~1-2 MiB blocks so DMA granularity amortizes the ~0.35 us per-grid-step
        overhead (streaming kernels hit ~85%+ of HBM roofline at >= 1 MiB).
      * VMEM budget: double-buffered in+out ~= 4x block bytes; 2 MiB blocks ->
        8 MiB, under v5e's 16 MiB scoped-VMEM default. No override needed.
      * On large problems keep >= 8 grid steps so v7x's two TensorCores both
        get work along the "parallel" axis, but never shrink below 512-row
        (256 KiB f32) blocks, which would start costing DMA efficiency.
    """
    max_block_rows = max(sub_mult, (max_block_rows // sub_mult) * sub_mult)
    if rows <= max_block_rows:
        # Small problem: one (or a few) blocks covering everything.
        return max(sub_mult, _round_up(rows, sub_mult))
    br = max_block_rows
    floor_br = max(sub_mult, min(br, 512))
    while br > floor_br and _cdiv(rows, br) < 8:
        new_br = max(floor_br, ((br // 2) // sub_mult) * sub_mult)
        if new_br >= br:
            break
        br = new_br
    return br


def logreg_kernel(wb_ref, x_ref, o_ref):
    # wb_ref: (2,) f32 in SMEM -> [weight, bias]  (1x1 Linear degenerates to scalars)
    # x_ref, o_ref: (block_rows, 128) lane-dense tiles in VMEM.
    w = wb_ref[0]
    b = wb_ref[1]
    z = x_ref[...].astype(jnp.float32) * w + b        # Linear: x @ W^T + b (W is 1x1)
    o_ref[...] = jax.nn.sigmoid(z).astype(o_ref.dtype)  # exp on EUP; cast in-kernel


def logic_regression_forward_slab(x_slab, weight, bias, *, block_rows,
                                  out_dtype=jnp.float32):
    """Core pallas_call on a lane-dense (R, 128) slab. Zero wrapper HBM traffic.

    Callers that can keep their data in slab format should use this directly
    (persistent-slab storage, per the perf review); `logic_regression_forward`
    below is the (N, 1)-shaped convenience API.
    """
    R, L = x_slab.shape
    assert L == _LANES, f"slab lane dim must be {_LANES}, got {L}"
    assert R % block_rows == 0, "slab rows must be a multiple of block_rows"

    # Pack weight + bias into one flat SMEM array (a single tiny 1-D scalar op).
    wb = jnp.concatenate(
        [weight.reshape(-1).astype(jnp.float32), bias.reshape(-1).astype(jnp.float32)]
    )  # shape (2,)

    grid = (R // block_rows,)
    return pl.pallas_call(
        logreg_kernel,
        out_shape=jax.ShapeDtypeStruct((R, L), out_dtype),
        grid=grid,
        in_specs=[
            pl.BlockSpec(memory_space=pltpu.SMEM),                 # wb (2,)
            pl.BlockSpec((block_rows, _LANES), lambda i: (i, 0)),  # x slab tile
        ],
        out_specs=pl.BlockSpec((block_rows, _LANES), lambda i: (i, 0)),
        compiler_params=pltpu.CompilerParams(
            # 2x split on v7x (2 TCs); measured no-op on single-TC v5e/v6e.
            dimension_semantics=("parallel",),
        ),
    )(wb, x_slab)


@functools.partial(jax.jit, static_argnames=("block_rows", "max_block_rows", "out_dtype"))
def logic_regression_forward(x, weight, bias, *, block_rows=None,
                             max_block_rows=_MAX_BLOCK_ROWS, out_dtype=jnp.float32):
    """Pallas equivalent of torch.sigmoid(nn.Linear(1, 1)(x)) for x of shape (N, 1).

    Fast path (N a multiple of block_rows*128): the (N, 1) <-> (R, 128) slab
    conversions are pure contiguous reshapes (bitcasts, no HBM copies), so the
    whole op is 1 read + 1 write of ~4N bytes — the memory-bound ideal.
    Ragged N falls back to a single pad pass + tail slice.
    """
    N = x.shape[0]
    x_flat = x.reshape(-1)

    sub = _sublane_multiple(x.dtype, out_dtype)
    rows = _cdiv(N, _LANES)
    br = block_rows if block_rows is not None else _choose_block_rows(rows, sub, max_block_rows)
    br = max(sub, _round_up(br, sub))

    rows_padded = _round_up(rows, br)
    total = rows_padded * _LANES

    if total == N:
        # Free bitcast reshape: same contiguous row-major buffer, no HBM copy.
        x_slab = x_flat.reshape(rows_padded, _LANES)
    else:
        # Ragged N: one pad pass.  Persistent-slab callers should build the slab
        # once and call logic_regression_forward_slab directly to avoid this.
        x_slab = jnp.pad(x_flat, (0, total - N)).reshape(rows_padded, _LANES)

    out_slab = logic_regression_forward_slab(
        x_slab, weight, bias, block_rows=br, out_dtype=out_dtype
    )

    if total == N:
        return out_slab.reshape(N, 1)  # free bitcast reshape back
    # Padded tail rows hold sigmoid(bias) of zeros (benign); drop them here.
    return out_slab.reshape(-1)[:N].reshape(N, 1)


if __name__ == "__main__":
    key = jax.random.PRNGKey(0)
    kx1, kx2, kw, kb = jax.random.split(key, 4)

    # Deterministic nn.Linear(1, 1) parameters: weight (1, 1), bias (1,).
    weight = jax.random.uniform(kw, (1, 1), dtype=jnp.float32, minval=-1.0, maxval=1.0)
    bias = jax.random.uniform(kb, (1,), dtype=jnp.float32, minval=-1.0, maxval=1.0)

    # Case 1: N a multiple of the block element count -> zero-copy reshape path
    # (no pad, no output slice; the memory-bound ideal).
    N1 = 4096
    x1 = jax.random.normal(kx1, (N1, 1), dtype=jnp.float32)
    out1 = jax.block_until_ready(logic_regression_forward(x1, weight, bias))
    ref1 = jax.nn.sigmoid(x1 @ weight.T + bias)
    assert out1.shape == (N1, 1)
    assert jnp.allclose(out1, ref1, atol=1e-5, rtol=1e-5)

    # Case 2: ragged N with an explicitly tiny block -> exercises the pad/slice
    # tail path and a multi-step grid. Correctness test only; block_rows=8 is
    # never a performance configuration (defaults pick ~MiB-scale blocks).
    N2 = 3000
    x2 = jax.random.normal(kx2, (N2, 1), dtype=jnp.float32)
    out2 = jax.block_until_ready(logic_regression_forward(x2, weight, bias, block_rows=8))
    ref2 = jax.nn.sigmoid(x2 @ weight.T + bias)
    assert out2.shape == (N2, 1)
    assert jnp.allclose(out2, ref2, atol=1e-5, rtol=1e-5)

    print("KERNEL_OK")
</pallas_src>

<mosaic_0001>
module attributes {stable_mosaic.version = 11 : i64} {
  func.func @logreg_kernel(%arg0: i32, %arg1: memref<2xf32, #tpu.memory_space<smem>>, %arg2: memref<32x128xf32, #tpu.memory_space<vmem>>, %arg3: memref<32x128xf32, #tpu.memory_space<vmem>>) attributes {dimension_semantics = [#tpu.dimension_semantics<parallel>], iteration_bounds = array<i64: 1>, scalar_prefetch = 0 : i64, scratch_operands = 0 : i64, tpu.core_type = #tpu.core_type<tc>, window_params = [{transform_indices = @transform_0, window_bounds = array<i64: 2>}, {transform_indices = @transform_1, window_bounds = array<i64: 32, 128>}, {transform_indices = @transform_2, window_bounds = array<i64: 32, 128>}]} {
    %c0 = arith.constant 0 : index
    %0 = memref.load %arg1[%c0] : memref<2xf32, #tpu.memory_space<smem>>
    %c1 = arith.constant 1 : index
    %1 = memref.load %arg1[%c1] : memref<2xf32, #tpu.memory_space<smem>>
    %c0_0 = arith.constant 0 : index
    %c0_1 = arith.constant 0 : index
    %2 = vector.load %arg2[%c0_0, %c0_1] : memref<32x128xf32, #tpu.memory_space<vmem>>, vector<32x128xf32>
    %3 = vector.broadcast %0 : f32 to vector<32x128xf32>
    %4 = arith.mulf %2, %3 : vector<32x128xf32>
    %5 = vector.broadcast %1 : f32 to vector<32x128xf32>
    %6 = arith.addf %4, %5 : vector<32x128xf32>
    %7 = arith.negf %6 : vector<32x128xf32>
    %8 = math.exp %7 : vector<32x128xf32>
    %cst = arith.constant 1.000000e+00 : f32
    %9 = vector.broadcast %cst : f32 to vector<32x128xf32>
    %10 = arith.addf %9, %8 : vector<32x128xf32>
    %11 = arith.divf %9, %10 : vector<32x128xf32>
    %c0_2 = arith.constant 0 : index
    %c0_3 = arith.constant 0 : index
    %12 = vector.load %arg3[%c0_2, %c0_3] : memref<32x128xf32, #tpu.memory_space<vmem>>, vector<32x128xf32>
    tpu.vector_store %arg3[%c0_2, %c0_3], %11 {strides = array<i32>} : memref<32x128xf32, #tpu.memory_space<vmem>>, vector<32x128xf32>,
    return
  }
  func.func @transform_0(%arg0: i32) -> i32 {
    %c0_i32 = arith.constant 0 : i32
    %c0_i32_0 = arith.constant 0 : i32
    return %c0_i32 : i32
  }
  func.func @transform_1(%arg0: i32) -> (i32, i32) {
    %c0_i32 = arith.constant 0 : i32
    %c0_i32_0 = arith.constant 0 : i32
    return %arg0, %c0_i32 : i32, i32
  }
  func.func @transform_2(%arg0: i32) -> (i32, i32) {
    %c0_i32 = arith.constant 0 : i32
    %c0_i32_0 = arith.constant 0 : i32
    return %arg0, %c0_i32 : i32, i32
  }
}

</mosaic_0001>

<llo_original>
// kernel: logic_regression_forward.1
$region0: #{logic_regression_forward.1}
  #allocation0 [shape = 'u32[]', space=smem, size = 0x4, offset = 0x4, fixed_abs, tag = 'smem constant byte address 0x4 - core index']
  #allocation1 [shape = 'u32[144,128]{1,0:T(1,128)}', space=vmem, size = 0x12000, scoped, tag = 'internal scratch']
  %s0 = inlined_call_operand.vmem [shape: f32[2], index: 0, kind: input, shape index: {}]
  %s1 = inlined_call_operand.hbm [shape: f32[32,128], index: 1, kind: input, shape index: {}]
  %s2 = inlined_call_operand.hbm [shape: f32[32,128], index: 2, kind: output, shape index: {}]
  %s3 = sld [smem:[#allocation0]]
  $region26: #{logic_regression_forward.1} parent=0
    _
  %s5 = ssub.s32 1, %s3
  %s6 = scalar_select 0, %s5, %s3
  $region1: #{logic_regression_forward.1} parent=0
    #allocation2 [shape = 'u8[512]{0}', space=smem, size = 0x200, scoped, tag = 'input window, operand 0, single buffered']
    #allocation3 [shape = 's32[1]{0}', space=sflag, size = 0x4, scoped, tag = 'scoped memory for logic_regression_forward.1']
    #allocation4 [shape = 's32[1]{0}', space=sflag, size = 0x4, scoped, tag = 'scoped memory for logic_regression_forward.1']
    #allocation5 [shape = 's32[1]{0}', space=sflag, size = 0x4, scoped, tag = 'scoped memory for logic_regression_forward.1']
    #allocation6 [shape = 'u8[16384]{0}', space=vmem, size = 0x4000, scoped, tag = 'input window, operand 1, single buffered']
    #allocation7 [shape = 'u8[16384]{0}', space=vmem, size = 0x4000, scoped, tag = 'output window, operand 0, single buffered']
    %7 = vsyncpa [#allocation5], 0
    %8 = vsyncpa [#allocation3], 0
    %9 = vsyncpa [#allocation4], 0
    // Predicated region
    $region2: #{logic_regression_forward.1} parent=1 // pred_check
      _
    $region3: #{logic_regression_forward.1} parent=1 // pred_check_branch
      %11 = sbr.rel (0) target = $region5
    $region4: #{logic_regression_forward.1} parent=1 // pred_region
      %s13 = ssub.s32 16, 16
      %14 = vsyncadd [#allocation5], %s13
      %s16 = sshll.u32 %s0, 4
      %s17 = int_to_ptr.vmem [resolvable:$true] %s16
      %19 = dma.vmem_to_smem %s17, 16, [#allocation2], [#allocation5]
    $region5: #{logic_regression_forward.1} parent=1 // pred_fallthru
      _
    // Predicated region
    $region6: #{logic_regression_forward.1} parent=1 // pred_check
      _
    $region7: #{logic_regression_forward.1} parent=1 // pred_check_branch
      %21 = sbr.rel (0) target = $region9
    $region8: #{logic_regression_forward.1} parent=1 // pred_region
      %s23 = ssub.s32 512, 512
      %24 = vsyncadd [#allocation3], %s23
      %s25 = sshll.u32 [#allocation6], 4
      %s26 = int_to_ptr.vmem [resolvable:$true] %s25
      %31 = dma.hbm_to_vmem [thread:$0]  %s1, 512, %s26, [#allocation3], 128, 128, 8
    $region9: #{logic_regression_forward.1} parent=1 // pred_fallthru
      _
    // Predicated region
    $region10: #{logic_regression_forward.1} parent=1 // pred_check
      _
    $region11: #{logic_regression_forward.1} parent=1 // pred_check_branch
      %33 = sbr.rel (0) target = $region13
    $region12: #{logic_regression_forward.1} parent=1 // pred_region
      %34 = dma.done [#allocation5], 16
    $region13: #{logic_regression_forward.1} parent=1 // pred_fallthru
      _
    // Predicated region
    $region14: #{logic_regression_forward.1} parent=1 // pred_check
      _
    $region15: #{logic_regression_forward.1} parent=1 // pred_check_branch
      %36 = sbr.rel (0) target = $region17
    $region16: #{logic_regression_forward.1} parent=1 // pred_region
      %37 = dma.done [#allocation3], 512
    $region17: #{logic_regression_forward.1} parent=1 // pred_fallthru
      _
    %38 = sfence
    %s39 = sld [smem:[#allocation2]]
    %s40 = sld [smem:[#allocation2 + $0x1]]
    %v41 = vld [vmem:[#allocation6] sm:$0xff]
    %v42 = vld [vmem:[#allocation6 + $0x8] sm:$0xff]
    %v43 = vld [vmem:[#allocation6 + $0x10] sm:$0xff]
    %v44 = vld [vmem:[#allocation6 + $0x18] sm:$0xff]
    %v45 = vstv %s39
    %v46 = vmul.f32 %v41, %v45
    %v47 = vmul.f32 %v42, %v45
    %v48 = vmul.f32 %v43, %v45
    %v49 = vmul.f32 %v44, %v45
    %v50 = vstv %s40
    %v51 = vadd.f32 %v46, %v50
    %v52 = vadd.f32 %v47, %v50
    %v53 = vadd.f32 %v48, %v50
    %v54 = vadd.f32 %v49, %v50
    %v55 = vxor.u32 %v51, 2147483648
    %v56 = vxor.u32 %v52, 2147483648
    %v57 = vxor.u32 %v53, 2147483648
    %v58 = vxor.u32 %v54, 2147483648
    %v59 = vmul.f32 %v55, 1.442695
    %v60 = vpow.pop %v59
    %v61 = vmul.f32 %v56, 1.442695
    %v62 = vpow.pop %v61
    %v63 = vmul.f32 %v57, 1.442695
    %v64 = vpow.pop %v63
    %v65 = vmul.f32 %v58, 1.442695
    %v66 = vpow.pop %v65
    %v67 = vadd.f32 %v60, 1.0
    %v68 = vadd.f32 %v62, 1.0
    %v69 = vadd.f32 %v64, 1.0
    %v70 = vadd.f32 %v66, 1.0
    %v71 = vrcp.pop %v67
    %v72 = vmul.f32 1.0, %v71
    %v73 = vrcp.pop %v68
    %v74 = vmul.f32 1.0, %v73
    %v75 = vrcp.pop %v69
    %v76 = vmul.f32 1.0, %v75
    %v77 = vrcp.pop %v70
    %v78 = vmul.f32 1.0, %v77
    %79 = vst [vmem:[#allocation7] sm:$0xff] %v72
    %80 = vst [vmem:[#allocation7 + $0x8] sm:$0xff] %v74
    %81 = vst [vmem:[#allocation7 + $0x10] sm:$0xff] %v76
    %82 = vst [vmem:[#allocation7 + $0x18] sm:$0xff] %v78
    // Predicated region
    $region18: #{logic_regression_forward.1} parent=1 // pred_check
      _
    $region19: #{logic_regression_forward.1} parent=1 // pred_check_branch
      %84 = sbr.rel (0) target = $region21
    $region20: #{logic_regression_forward.1} parent=1 // pred_region
      %s86 = ssub.s32 512, 512
      %87 = vsyncadd [#allocation4], %s86
      %s88 = sshll.u32 [#allocation7], 4
      %s89 = int_to_ptr.vmem [resolvable:$true] %s88
      %94 = dma.vmem_to_hbm [thread:$0]  %s89, 512, %s2, [#allocation4], 128, 128, 8
    $region21: #{logic_regression_forward.1} parent=1 // pred_fallthru
      _
    // Predicated region
    $region22: #{logic_regression_forward.1} parent=1 // pred_check
      _
    $region23: #{logic_regression_forward.1} parent=1 // pred_check_branch
      %96 = sbr.rel (0) target = $region25
    $region24: #{logic_regression_forward.1} parent=1 // pred_region
      %97 = dma.done [#allocation4], 512
    $region25: #{logic_regression_forward.1} parent=1 // pred_fallthru
      _
    %98 = vsyncpa [#allocation3], 1
    %99 = vsyncpa [#allocation4], 1
    %100 = vsyncpa [#allocation5], 1

</llo_original>
